<compile_context>
chip_gen: v6e
topology: v6e:2x2x1
jax: 0.10.0
libtpu: 0.0.40
codegen_flags: <defaults>
</compile_context>

<pallas_src>
import jax
import jax.numpy as jnp
from jax.experimental import pallas as pl
from jax.experimental.pallas import tpu as pltpu


INPUT_DIM = 2
HIDDEN_DIM = 100
OUTPUT_DIM = 1
HIDDEN_PAD = 128      # lane/sublane-aligned hidden width
LANE = 128
PACK_W = 8            # packed small-parameter ref width
MAX_TILE = 8192       # keeps (128, tile) f32 intermediates + double-buffered IO
                      # inside the scoped-VMEM defaults on every generation

# packed-parameter column layout
_C_W1X, _C_W1T, _C_B1, _C_B2, _C_W3, _C_B3 = 0, 1, 2, 3, 4, 5


def mlp_kernel(x_ref, t_ref, w2_ref, p_ref, o_ref):
    # Activations are (features, batch_tile): batch on lanes, features on sublanes.
    x = x_ref[...]                                   # (1, TB)
    t = t_ref[...]                                   # (1, TB)

    w1x = p_ref[:, _C_W1X:_C_W1X + 1]                # (128, 1)
    w1t = p_ref[:, _C_W1T:_C_W1T + 1]                # (128, 1)
    b1 = p_ref[:, _C_B1:_C_B1 + 1]                   # (128, 1)
    b2 = p_ref[:, _C_B2:_C_B2 + 1]                   # (128, 1)
    w3 = p_ref[:, _C_W3:_C_W3 + 1]                   # (128, 1)
    b3 = p_ref[0:1, _C_B3:_C_B3 + 1]                 # (1, 1)

    # Layer 1 (K=2): degenerate matmul replaced by two VPU broadcast-FMAs.
    h1 = jnp.tanh(w1x * x + w1t * t + b1)            # (128, TB)

    # Layer 2: lane/sublane-aligned 128x128 MXU matmul with f32 accumulation.
    h2 = jnp.tanh(
        jnp.dot(w2_ref[...], h1, preferred_element_type=jnp.float32) + b2
    )                                                # (128, TB)

    # Layer 3 (N=1): broadcast-multiply + sublane reduction; result stays
    # lane-dense along the batch.  Purely per-lane, so ragged-block garbage
    # lanes never contaminate valid lanes.
    o = jnp.sum(h2 * w3, axis=0, keepdims=True) + b3  # (1, TB)
    o_ref[...] = o.astype(o_ref.dtype)


def _round_up(a, m):
    return ((a + m - 1) // m) * m


def nn_forward(x, t, params, *, batch_tile=4096):
    """Pallas equivalent of NN.forward(x, t) = net(cat([x, t], dim=1)).

    `params` are unpadded, in (in_features, out_features) layout (PyTorch
    nn.Linear weights pre-transposed).  Padding / packing into the kernel
    layout happens here (cheap, wrapper-side, weights only).
    """
    w1, b1, w2, b2, w3, b3 = params
    n = x.shape[0]
    hp = HIDDEN_PAD - HIDDEN_DIM

    # --- weights: W^T with hidden zero-padded to 128 (exact, see header) ----
    w1k = jnp.pad(w1, ((0, 0), (0, hp))).T.astype(jnp.float32)    # (128, 2)
    b1k = jnp.pad(b1, ((0, 0), (0, hp))).T.astype(jnp.float32)    # (128, 1)
    w2k = jnp.pad(w2, ((0, hp), (0, hp))).T.astype(jnp.float32)   # (128, 128)
    b2k = jnp.pad(b2, ((0, 0), (0, hp))).T.astype(jnp.float32)    # (128, 1)
    w3k = jnp.pad(w3, ((0, hp), (0, 0))).astype(jnp.float32)      # (128, 1)

    # Pack all small params into one VMEM-resident (128, 8) ref.
    p_pack = jnp.concatenate(
        [
            w1k,                                                   # cols 0..1
            b1k,                                                   # col 2
            b2k,                                                   # col 3
            w3k,                                                   # col 4
            jnp.full((HIDDEN_PAD, 1), b3[0, 0], jnp.float32),      # col 5
            jnp.zeros((HIDDEN_PAD, PACK_W - 6), jnp.float32),      # pad to 8
        ],
        axis=1,
    )

    # --- activations: zero-copy (1, n) rows, no wrapper-side padding --------
    xr = x.astype(jnp.float32).reshape(1, n)
    tr = t.astype(jnp.float32).reshape(1, n)

    # --- tile selection ------------------------------------------------------
    # Big lane-aligned tiles amortize per-step overhead; cap for VMEM safety;
    # shrink so the parallel axis has >= 2 steps (v7x megacore) when possible.
    desired = min(max(_round_up(batch_tile, LANE), LANE), MAX_TILE)
    n_lanes = _round_up(max(n, 1), LANE)
    if n_lanes >= 2 * LANE:
        tile = min(desired, _round_up(pl.cdiv(n, 2), LANE))
    else:
        tile = LANE
    tile = max(tile, LANE)
    grid = (pl.cdiv(n, tile),)

    cost = pl.CostEstimate(
        flops=int(n) * (2 * INPUT_DIM * HIDDEN_PAD
                        + 2 * HIDDEN_PAD * HIDDEN_PAD
                        + 2 * HIDDEN_PAD),
        transcendentals=int(n) * 2 * HIDDEN_PAD,
        bytes_accessed=int(n) * 12
        + 4 * (HIDDEN_PAD * HIDDEN_PAD + HIDDEN_PAD * PACK_W),
    )

    const = lambda shape: pl.BlockSpec(shape, lambda i: (0, 0))  # VMEM-resident

    out = pl.pallas_call(
        mlp_kernel,
        out_shape=jax.ShapeDtypeStruct((1, n), jnp.float32),
        grid_spec=pltpu.PrefetchScalarGridSpec(
            num_scalar_prefetch=0,
            grid=grid,
            in_specs=[
                pl.BlockSpec((1, tile), lambda i: (0, i)),   # x row (lane-dense)
                pl.BlockSpec((1, tile), lambda i: (0, i)),   # t row (lane-dense)
                const((HIDDEN_PAD, HIDDEN_PAD)),             # W2^T
                const((HIDDEN_PAD, PACK_W)),                 # packed small params
            ],
            out_specs=pl.BlockSpec((1, tile), lambda i: (0, i)),  # lane-dense out
        ),
        compiler_params=pltpu.CompilerParams(
            dimension_semantics=("parallel",),
        ),
        cost_estimate=cost,
    )(xr, tr, w2k, p_pack)

    return out.reshape(n, OUTPUT_DIM)


def init_params(key):
    """Deterministic init matching PyTorch nn.Linear default: U(-1/sqrt(fan_in), +)."""
    ks = jax.random.split(key, 6)

    def linear(kw, kb, fan_in, fan_out):
        bound = 1.0 / jnp.sqrt(jnp.float32(fan_in))
        w = jax.random.uniform(kw, (fan_in, fan_out), jnp.float32, -bound, bound)
        b = jax.random.uniform(kb, (1, fan_out), jnp.float32, -bound, bound)
        return w, b

    w1, b1 = linear(ks[0], ks[1], INPUT_DIM, HIDDEN_DIM)
    w2, b2 = linear(ks[2], ks[3], HIDDEN_DIM, HIDDEN_DIM)
    w3, b3 = linear(ks[4], ks[5], HIDDEN_DIM, OUTPUT_DIM)
    return (w1, b1, w2, b2, w3, b3)


def nn_forward_ref(x, t, params):
    w1, b1, w2, b2, w3, b3 = params
    h = jnp.concatenate([x, t], axis=1)
    h = jnp.tanh(h @ w1 + b1)
    h = jnp.tanh(h @ w2 + b2)
    return h @ w3 + b3


if __name__ == "__main__":
    key = jax.random.PRNGKey(0)
    kp, kx, kt = jax.random.split(key, 3)

    params = init_params(kp)

    # Small batch (single grid step, ragged block n=32 < 128 lanes).
    batch = 32
    x = jax.random.uniform(kx, (batch, 1), jnp.float32)   # spatial coordinate
    t = jax.random.uniform(kt, (batch, 1), jnp.float32)   # time coordinate

    out = jax.block_until_ready(nn_forward(x, t, params))
    ref = nn_forward_ref(x, t, params)
    assert out.shape == (batch, OUTPUT_DIM)
    assert jnp.allclose(out, ref, atol=1e-4, rtol=1e-4)

    # Non-multiple batch exercising the ragged last block and a >=2-step
    # ("parallel") grid so both v7x TensorCores get work.
    batch2 = 1000
    kx2, kt2 = jax.random.split(jax.random.PRNGKey(1), 2)
    x2 = jax.random.uniform(kx2, (batch2, 1), jnp.float32)
    t2 = jax.random.uniform(kt2, (batch2, 1), jnp.float32)
    out2 = jax.block_until_ready(nn_forward(x2, t2, params))
    ref2 = nn_forward_ref(x2, t2, params)
    assert out2.shape == (batch2, OUTPUT_DIM)
    assert jnp.allclose(out2, ref2, atol=1e-4, rtol=1e-4)

    print("KERNEL_OK")
</pallas_src>

<mosaic_0001>
module attributes {stable_mosaic.version = 11 : i64} {
  func.func @mlp_kernel(%arg0: i32, %arg1: memref<1x128xf32, #tpu.memory_space<vmem>>, %arg2: memref<1x128xf32, #tpu.memory_space<vmem>>, %arg3: memref<128x128xf32, #tpu.memory_space<vmem>>, %arg4: memref<128x8xf32, #tpu.memory_space<vmem>>, %arg5: memref<1x128xf32, #tpu.memory_space<vmem>>) attributes {dimension_semantics = [#tpu.dimension_semantics<parallel>], iteration_bounds = array<i64: 1>, scalar_prefetch = 0 : i64, scratch_operands = 0 : i64, tpu.core_type = #tpu.core_type<tc>, window_params = [{transform_indices = @transform_0, window_bounds = array<i64: 1, 128>}, {transform_indices = @transform_1, window_bounds = array<i64: 1, 128>}, {pipeline_mode = #tpu.pipeline_mode<synchronous>, transform_indices = @transform_2, window_bounds = array<i64: 128, 128>}, {pipeline_mode = #tpu.pipeline_mode<synchronous>, transform_indices = @transform_3, window_bounds = array<i64: 128, 8>}, {transform_indices = @transform_4, window_bounds = array<i64: 1, 128>}]} {
    %c0 = arith.constant 0 : index
    %c0_0 = arith.constant 0 : index
    %0 = vector.load %arg1[%c0, %c0_0] : memref<1x128xf32, #tpu.memory_space<vmem>>, vector<1x128xf32>
    %c0_1 = arith.constant 0 : index
    %c0_2 = arith.constant 0 : index
    %1 = vector.load %arg2[%c0_1, %c0_2] : memref<1x128xf32, #tpu.memory_space<vmem>>, vector<1x128xf32>
    %c0_3 = arith.constant 0 : index
    %c0_4 = arith.constant 0 : index
    %2 = vector.load %arg4[%c0_3, %c0_4] : memref<128x8xf32, #tpu.memory_space<vmem>>, vector<128x1xf32>
    %c0_5 = arith.constant 0 : index
    %c1 = arith.constant 1 : index
    %3 = vector.load %arg4[%c0_5, %c1] : memref<128x8xf32, #tpu.memory_space<vmem>>, vector<128x1xf32>
    %c0_6 = arith.constant 0 : index
    %c2 = arith.constant 2 : index
    %4 = vector.load %arg4[%c0_6, %c2] : memref<128x8xf32, #tpu.memory_space<vmem>>, vector<128x1xf32>
    %c0_7 = arith.constant 0 : index
    %c3 = arith.constant 3 : index
    %5 = vector.load %arg4[%c0_7, %c3] : memref<128x8xf32, #tpu.memory_space<vmem>>, vector<128x1xf32>
    %c0_8 = arith.constant 0 : index
    %c4 = arith.constant 4 : index
    %6 = vector.load %arg4[%c0_8, %c4] : memref<128x8xf32, #tpu.memory_space<vmem>>, vector<128x1xf32>
    %c0_9 = arith.constant 0 : index
    %c5 = arith.constant 5 : index
    %7 = vector.load %arg4[%c0_9, %c5] : memref<128x8xf32, #tpu.memory_space<vmem>>, vector<1x1xf32>
    %8 = vector.broadcast %2 : vector<128x1xf32> to vector<128x128xf32>
    %9 = vector.broadcast %0 : vector<1x128xf32> to vector<128x128xf32>
    %10 = arith.mulf %8, %9 : vector<128x128xf32>
    %11 = vector.broadcast %3 : vector<128x1xf32> to vector<128x128xf32>
    %12 = vector.broadcast %1 : vector<1x128xf32> to vector<128x128xf32>
    %13 = arith.mulf %11, %12 : vector<128x128xf32>
    %14 = arith.addf %10, %13 : vector<128x128xf32>
    %15 = vector.broadcast %4 : vector<128x1xf32> to vector<128x128xf32>
    %16 = arith.addf %14, %15 : vector<128x128xf32>
    %17 = math.tanh %16 : vector<128x128xf32>
    %c0_10 = arith.constant 0 : index
    %c0_11 = arith.constant 0 : index
    %18 = vector.load %arg3[%c0_10, %c0_11] : memref<128x128xf32, #tpu.memory_space<vmem>>, vector<128x128xf32>
    %cst = arith.constant dense<0.000000e+00> : vector<128x128xf32>
    %19 = tpu.matmul %18, %17, %cst {dimension_numbers = #tpu.dot_dimension_numbers<[1], [0], [0], [1], [0, 0, 1, 1], [], []>} : vector<128x128xf32>, vector<128x128xf32>, vector<128x128xf32> -> vector<128x128xf32>
    %20 = vector.broadcast %5 : vector<128x1xf32> to vector<128x128xf32>
    %21 = arith.addf %19, %20 : vector<128x128xf32>
    %22 = math.tanh %21 : vector<128x128xf32>
    %23 = vector.broadcast %6 : vector<128x1xf32> to vector<128x128xf32>
    %24 = arith.mulf %22, %23 : vector<128x128xf32>
    %cst_12 = arith.constant dense<0.000000e+00> : vector<128xf32>
    %25 = vector.multi_reduction <add>, %24, %cst_12 [0] : vector<128x128xf32> to vector<128xf32>
    %26 = vector.shape_cast %25 : vector<128xf32> to vector<1x128xf32>
    %27 = vector.broadcast %7 : vector<1x1xf32> to vector<1x128xf32>
    %28 = arith.addf %26, %27 : vector<1x128xf32>
    %c0_13 = arith.constant 0 : index
    %c0_14 = arith.constant 0 : index
    %29 = vector.load %arg5[%c0_13, %c0_14] : memref<1x128xf32, #tpu.memory_space<vmem>>, vector<1x128xf32>
    tpu.vector_store %arg5[%c0_13, %c0_14], %28 {strides = array<i32>} : memref<1x128xf32, #tpu.memory_space<vmem>>, vector<1x128xf32>,
    return
  }
  func.func @transform_0(%arg0: i32) -> (i32, i32) {
    %c0_i32 = arith.constant 0 : i32
    %c0_i32_0 = arith.constant 0 : i32
    return %c0_i32, %arg0 : i32, i32
  }
  func.func @transform_1(%arg0: i32) -> (i32, i32) {
    %c0_i32 = arith.constant 0 : i32
    %c0_i32_0 = arith.constant 0 : i32
    return %c0_i32, %arg0 : i32, i32
  }
  func.func @transform_2(%arg0: i32) -> (i32, i32) {
    %c0_i32 = arith.constant 0 : i32
    %c0_i32_0 = arith.constant 0 : i32
    %c0_i32_1 = arith.constant 0 : i32
    return %c0_i32, %c0_i32_0 : i32, i32
  }
  func.func @transform_3(%arg0: i32) -> (i32, i32) {
    %c0_i32 = arith.constant 0 : i32
    %c0_i32_0 = arith.constant 0 : i32
    %c0_i32_1 = arith.constant 0 : i32
    return %c0_i32, %c0_i32_0 : i32, i32
  }
  func.func @transform_4(%arg0: i32) -> (i32, i32) {
    %c0_i32 = arith.constant 0 : i32
    %c0_i32_0 = arith.constant 0 : i32
    return %c0_i32, %arg0 : i32, i32
  }
}

</mosaic_0001>

<llo_original>
// kernel: tpu_custom_call.1
$region0: #{tpu_custom_call.1}
  #allocation0 [shape = 'u32[]', space=smem, size = 0x4, offset = 0x4, fixed_abs, tag = 'smem constant byte address 0x4 - core index']
  #allocation1 [shape = 'u32[144,128]{1,0:T(1,128)}', space=vmem, size = 0x12000, scoped, tag = 'internal scratch']
  %s0 = inlined_call_operand.vmem [shape: f32[1,32], index: 0, kind: input, shape index: {}]
  %s1 = inlined_call_operand.vmem [shape: f32[1,32], index: 1, kind: input, shape index: {}]
  %s2 = inlined_call_operand.vmem [shape: f32[128,128], index: 2, kind: input, shape index: {}]
  %s3 = inlined_call_operand.vmem [shape: f32[128,8], index: 3, kind: input, shape index: {}]
  %s4 = inlined_call_operand.hbm [shape: f32[1,32], index: 4, kind: output, shape index: {}]
  %s5 = sld [smem:[#allocation0]]
  $region26: #{tpu_custom_call.1} parent=0
    _
  %s7 = ssub.s32 1, %s5
  %s8 = scalar_select 0, %s7, %s5
  $region1: #{tpu_custom_call.1} parent=0
    #allocation2 [shape = 'u8[512]{0}', space=vmem, size = 0x400, scoped, tag = 'output window, operand 0, single buffered']
    #allocation3 [shape = 's32[1]{0}', space=sflag, size = 0x4, scoped, tag = 'scoped memory for tpu_custom_call.1']
    %9 = vsyncpa [#allocation3], 0
    // Predicated region
    $region2: #{tpu_custom_call.1} parent=1 // pred_check
      _
    $region3: #{tpu_custom_call.1} parent=1 // pred_check_branch
      %11 = sbr.rel (0) target = $region5
    $region4: #{tpu_custom_call.1} parent=1 // pred_region
      _
    $region5: #{tpu_custom_call.1} parent=1 // pred_fallthru
      _
    // Predicated region
    $region6: #{tpu_custom_call.1} parent=1 // pred_check
      _
    $region7: #{tpu_custom_call.1} parent=1 // pred_check_branch
      %13 = sbr.rel (0) target = $region9
    $region8: #{tpu_custom_call.1} parent=1 // pred_region
      _
    $region9: #{tpu_custom_call.1} parent=1 // pred_fallthru
      _
    // Predicated region
    $region10: #{tpu_custom_call.1} parent=1 // pred_check
      _
    $region11: #{tpu_custom_call.1} parent=1 // pred_check_branch
      %15 = sbr.rel (0) target = $region13
    $region12: #{tpu_custom_call.1} parent=1 // pred_region
      _
    $region13: #{tpu_custom_call.1} parent=1 // pred_fallthru
      _
    // Predicated region
    $region14: #{tpu_custom_call.1} parent=1 // pred_check
      _
    $region15: #{tpu_custom_call.1} parent=1 // pred_check_branch
      %17 = sbr.rel (0) target = $region17
    $region16: #{tpu_custom_call.1} parent=1 // pred_region
      _
    $region17: #{tpu_custom_call.1} parent=1 // pred_fallthru
      _
    %v18 = vld [vmem:[%s0] sm:$0x1]
    %v19 = vld [vmem:[%s1] sm:$0x1]
    %v20 = vld [vmem:[%s3] sm:$0xff]
    %v21 = vld [vmem:[%s3 + $0x8] sm:$0xff]
    %v22 = vld [vmem:[%s3 + $0x10] sm:$0xff]
    %v23 = vld [vmem:[%s3 + $0x18] sm:$0xff]
    %v24 = vld [vmem:[%s3 + $0x20] sm:$0xff]
    %v25 = vld [vmem:[%s3 + $0x28] sm:$0xff]
    %v26 = vld [vmem:[%s3 + $0x30] sm:$0xff]
    %v27 = vld [vmem:[%s3 + $0x38] sm:$0xff]
    %v28 = vld [vmem:[%s3 + $0x40] sm:$0xff]
    %v29 = vld [vmem:[%s3 + $0x48] sm:$0xff]
    %v30 = vld [vmem:[%s3 + $0x50] sm:$0xff]
    %v31 = vld [vmem:[%s3 + $0x58] sm:$0xff]
    %v32 = vld [vmem:[%s3 + $0x60] sm:$0xff]
    %v33 = vld [vmem:[%s3 + $0x68] sm:$0xff]
    %v34 = vld [vmem:[%s3 + $0x70] sm:$0xff]
    %v35 = vld [vmem:[%s3 + $0x78] sm:$0xff]
    %v36 = vld [vmem:[%s3] sm:$0x1]
    %38 = vset.pattern.permute.xlu0 0
    %39 = vperm.xlu0 %38, %v20
    %v40 = vpop.permute.xlu0 %39
    %43 = vset.pattern.permute.xlu0 0
    %44 = vperm.xlu0 %43, %v21
    %v45 = vpop.permute.xlu0 %44
    %48 = vset.pattern.permute.xlu0 0
    %49 = vperm.xlu0 %48, %v22
    %v50 = vpop.permute.xlu0 %49
    %53 = vset.pattern.permute.xlu0 0
    %54 = vperm.xlu0 %53, %v23
    %v55 = vpop.permute.xlu0 %54
    %58 = vset.pattern.permute.xlu0 0
    %59 = vperm.xlu0 %58, %v24
    %v60 = vpop.permute.xlu0 %59
    %63 = vset.pattern.permute.xlu0 0
    %64 = vperm.xlu0 %63, %v25
    %v65 = vpop.permute.xlu0 %64
    %68 = vset.pattern.permute.xlu0 0
    %69 = vperm.xlu0 %68, %v26
    %v70 = vpop.permute.xlu0 %69
    %73 = vset.pattern.permute.xlu0 0
    %74 = vperm.xlu0 %73, %v27
    %v75 = vpop.permute.xlu0 %74
    %78 = vset.pattern.permute.xlu0 0
    %79 = vperm.xlu0 %78, %v28
    %v80 = vpop.permute.xlu0 %79
    %83 = vset.pattern.permute.xlu0 0
    %84 = vperm.xlu0 %83, %v29
    %v85 = vpop.permute.xlu0 %84
    %88 = vset.pattern.permute.xlu0 0
    %89 = vperm.xlu0 %88, %v30
    %v90 = vpop.permute.xlu0 %89
    %93 = vset.pattern.permute.xlu0 0
    %94 = vperm.xlu0 %93, %v31
    %v95 = vpop.permute.xlu0 %94
    %98 = vset.pattern.permute.xlu0 0
    %99 = vperm.xlu0 %98, %v32
    %v100 = vpop.permute.xlu0 %99
    %103 = vset.pattern.permute.xlu0 0
    %104 = vperm.xlu0 %103, %v33
    %v105 = vpop.permute.xlu0 %104
    %108 = vset.pattern.permute.xlu0 0
    %109 = vperm.xlu0 %108, %v34
    %v110 = vpop.permute.xlu0 %109
    %113 = vset.pattern.permute.xlu0 0
    %114 = vperm.xlu0 %113, %v35
    %v115 = vpop.permute.xlu0 %114
    %v118 = vlaneseq
    %v119 = vshrl.u32 %v118, 7
    %v120 = vsub.s32 0, %v119
    %v121 = vrot.slane %v18, %v120
    %v123 = vmul.f32 %v40, %v121
    %v124 = vmul.f32 %v45, %v121
    %v125 = vmul.f32 %v50, %v121
    %v126 = vmul.f32 %v55, %v121
    %v127 = vmul.f32 %v60, %v121
    %v128 = vmul.f32 %v65, %v121
    %v129 = vmul.f32 %v70, %v121
    %v130 = vmul.f32 %v75, %v121
    %v131 = vmul.f32 %v80, %v121
    %v132 = vmul.f32 %v85, %v121
    %v133 = vmul.f32 %v90, %v121
    %v134 = vmul.f32 %v95, %v121
    %v135 = vmul.f32 %v100, %v121
    %v136 = vmul.f32 %v105, %v121
    %v137 = vmul.f32 %v110, %v121
    %v138 = vmul.f32 %v115, %v121
    %139 = vset.pattern.permute.xlu0 1
    %140 = vperm.xlu0 %139, %v20
    %v141 = vpop.permute.xlu0 %140
    %143 = vset.pattern.permute.xlu0 1
    %144 = vperm.xlu0 %143, %v21
    %v145 = vpop.permute.xlu0 %144
    %147 = vset.pattern.permute.xlu0 1
    %148 = vperm.xlu0 %147, %v22
    %v149 = vpop.permute.xlu0 %148
    %151 = vset.pattern.permute.xlu0 1
    %152 = vperm.xlu0 %151, %v23
    %v153 = vpop.permute.xlu0 %152
    %155 = vset.pattern.permute.xlu0 1
    %156 = vperm.xlu0 %155, %v24
    %v157 = vpop.permute.xlu0 %156
    %159 = vset.pattern.permute.xlu0 1
    %160 = vperm.xlu0 %159, %v25
    %v161 = vpop.permute.xlu0 %160
    %163 = vset.pattern.permute.xlu0 1
    %164 = vperm.xlu0 %163, %v26
    %v165 = vpop.permute.xlu0 %164
    %167 = vset.pattern.permute.xlu0 1
    %168 = vperm.xlu0 %167, %v27
    %v169 = vpop.permute.xlu0 %168
    %171 = vset.pattern.permute.xlu0 1
    %172 = vperm.xlu0 %171, %v28
    %v173 = vpop.permute.xlu0 %172
    %175 = vset.pattern.permute.xlu0 1
    %176 = vperm.xlu0 %175, %v29
    %v177 = vpop.permute.xlu0 %176
    %179 = vset.pattern.permute.xlu0 1
    %180 = vperm.xlu0 %179, %v30
    %v181 = vpop.permute.xlu0 %180
    %183 = vset.pattern.permute.xlu0 1
    %184 = vperm.xlu0 %183, %v31
    %v185 = vpop.permute.xlu0 %184
    %187 = vset.pattern.permute.xlu0 1
    %188 = vperm.xlu0 %187, %v32
    %v189 = vpop.permute.xlu0 %188
    %191 = vset.pattern.permute.xlu0 1
    %192 = vperm.xlu0 %191, %v33
    %v193 = vpop.permute.xlu0 %192
    %195 = vset.pattern.permute.xlu0 1
    %196 = vperm.xlu0 %195, %v34
    %v197 = vpop.permute.xlu0 %196
    %199 = vset.pattern.permute.xlu0 1
    %200 = vperm.xlu0 %199, %v35
    %v201 = vpop.permute.xlu0 %200
    %v204 = vlaneseq
    %v205 = vshrl.u32 %v204, 7
    %v206 = vsub.s32 0, %v205
    %v207 = vrot.slane %v19, %v206
    %v209 = vmul.f32 %v141, %v207
    %v210 = vmul.f32 %v145, %v207
    %v211 = vmul.f32 %v149, %v207
    %v212 = vmul.f32 %v153, %v207
    %v213 = vmul.f32 %v157, %v207
    %v214 = vmul.f32 %v161, %v207
    %v215 = vmul.f32 %v165, %v207
    %v216 = vmul.f32 %v169, %v207
    %v217 = vmul.f32 %v173, %v207
    %v218 = vmul.f32 %v177, %v207
    %v219 = vmul.f32 %v181, %v207
    %v220 = vmul.f32 %v185, %v207
    %v221 = vmul.f32 %v189, %v207
    %v222 = vmul.f32 %v193, %v207
    %v223 = vmul.f32 %v197, %v207
    %v224 = vmul.f32 %v201, %v207
    %v225 = vadd.f32 %v123, %v209
    %v226 = vadd.f32 %v124, %v210
    %v227 = vadd.f32 %v125, %v211
    %v228 = vadd.f32 %v126, %v212
    %v229 = vadd.f32 %v127, %v213
    %v230 = vadd.f32 %v128, %v214
    %v231 = vadd.f32 %v129, %v215
    %v232 = vadd.f32 %v130, %v216
    %v233 = vadd.f32 %v131, %v217
    %v234 = vadd.f32 %v132, %v218
    %v235 = vadd.f32 %v133, %v219
    %v236 = vadd.f32 %v134, %v220
    %v237 = vadd.f32 %v135, %v221
    %v238 = vadd.f32 %v136, %v222
    %v239 = vadd.f32 %v137, %v223
    %v240 = vadd.f32 %v138, %v224
    %241 = vset.pattern.permute.xlu0 2
    %242 = vperm.xlu0 %241, %v20
    %v243 = vpop.permute.xlu0 %242
    %245 = vset.pattern.permute.xlu0 2
    %246 = vperm.xlu0 %245, %v21
    %v247 = vpop.permute.xlu0 %246
    %249 = vset.pattern.permute.xlu0 2
    %250 = vperm.xlu0 %249, %v22
    %v251 = vpop.permute.xlu0 %250
    %253 = vset.pattern.permute.xlu0 2
    %254 = vperm.xlu0 %253, %v23
    %v255 = vpop.permute.xlu0 %254
    %257 = vset.pattern.permute.xlu0 2
    %258 = vperm.xlu0 %257, %v24
    %v259 = vpop.permute.xlu0 %258
    %261 = vset.pattern.permute.xlu0 2
    %262 = vperm.xlu0 %261, %v25
    %v263 = vpop.permute.xlu0 %262
    %265 = vset.pattern.permute.xlu0 2
    %266 = vperm.xlu0 %265, %v26
    %v267 = vpop.permute.xlu0 %266
    %269 = vset.pattern.permute.xlu0 2
    %270 = vperm.xlu0 %269, %v27
    %v271 = vpop.permute.xlu0 %270
    %273 = vset.pattern.permute.xlu0 2
    %274 = vperm.xlu0 %273, %v28
    %v275 = vpop.permute.xlu0 %274
    %277 = vset.pattern.permute.xlu0 2
    %278 = vperm.xlu0 %277, %v29
    %v279 = vpop.permute.xlu0 %278
    %281 = vset.pattern.permute.xlu0 2
    %282 = vperm.xlu0 %281, %v30
    %v283 = vpop.permute.xlu0 %282
    %285 = vset.pattern.permute.xlu0 2
    %286 = vperm.xlu0 %285, %v31
    %v287 = vpop.permute.xlu0 %286
    %289 = vset.pattern.permute.xlu0 2
    %290 = vperm.xlu0 %289, %v32
    %v291 = vpop.permute.xlu0 %290
    %293 = vset.pattern.permute.xlu0 2
    %294 = vperm.xlu0 %293, %v33
    %v295 = vpop.permute.xlu0 %294
    %297 = vset.pattern.permute.xlu0 2
    %298 = vperm.xlu0 %297, %v34
    %v299 = vpop.permute.xlu0 %298
    %301 = vset.pattern.permute.xlu0 2
    %302 = vperm.xlu0 %301, %v35
    %v303 = vpop.permute.xlu0 %302
    %v305 = vadd.f32 %v225, %v243
    %v306 = vadd.f32 %v226, %v247
    %v307 = vadd.f32 %v227, %v251
    %v308 = vadd.f32 %v228, %v255
    %v309 = vadd.f32 %v229, %v259
    %v310 = vadd.f32 %v230, %v263
    %v311 = vadd.f32 %v231, %v267
    %v312 = vadd.f32 %v232, %v271
    %v313 = vadd.f32 %v233, %v275
    %v314 = vadd.f32 %v234, %v279
    %v315 = vadd.f32 %v235, %v283
    %v316 = vadd.f32 %v236, %v287
    %v317 = vadd.f32 %v237, %v291
    %v318 = vadd.f32 %v238, %v295
    %v319 = vadd.f32 %v239, %v299
    %v320 = vadd.f32 %v240, %v303
    %v321 = vtanh.pop %v305
    %v322 = vtanh.pop %v306
    %v323 = vtanh.pop %v307
    %v324 = vtanh.pop %v308
    %v325 = vtanh.pop %v309
    %v326 = vtanh.pop %v310
    %v327 = vtanh.pop %v311
    %v328 = vtanh.pop %v312
    %v329 = vtanh.pop %v313
    %v330 = vtanh.pop %v314
    %v331 = vtanh.pop %v315
    %v332 = vtanh.pop %v316
    %v333 = vtanh.pop %v317
    %v334 = vtanh.pop %v318
    %v335 = vtanh.pop %v319
    %v336 = vtanh.pop %v320
    %v337 = vld [vmem:[%s2] sm:$0xff]
    %v338 = vld [vmem:[%s2 + $0x8] sm:$0xff]
    %v339 = vld [vmem:[%s2 + $0x10] sm:$0xff]
    %v340 = vld [vmem:[%s2 + $0x18] sm:$0xff]
    %v341 = vld [vmem:[%s2 + $0x20] sm:$0xff]
    %v342 = vld [vmem:[%s2 + $0x28] sm:$0xff]
    %v343 = vld [vmem:[%s2 + $0x30] sm:$0xff]
    %v344 = vld [vmem:[%s2 + $0x38] sm:$0xff]
    %v345 = vld [vmem:[%s2 + $0x40] sm:$0xff]
    %v346 = vld [vmem:[%s2 + $0x48] sm:$0xff]
    %v347 = vld [vmem:[%s2 + $0x50] sm:$0xff]
    %v348 = vld [vmem:[%s2 + $0x58] sm:$0xff]
    %v349 = vld [vmem:[%s2 + $0x60] sm:$0xff]
    %v350 = vld [vmem:[%s2 + $0x68] sm:$0xff]
    %v351 = vld [vmem:[%s2 + $0x70] sm:$0xff]
    %v352 = vld [vmem:[%s2 + $0x78] sm:$0xff]
    %353 = vset.pattern.permute.xlu0 3
    %354 = vperm.xlu0 %353, %v20
    %v355 = vpop.permute.xlu0 %354
    %357 = vset.pattern.permute.xlu0 3
    %358 = vperm.xlu0 %357, %v21
    %v359 = vpop.permute.xlu0 %358
    %361 = vset.pattern.permute.xlu0 3
    %362 = vperm.xlu0 %361, %v22
    %v363 = vpop.permute.xlu0 %362
    %365 = vset.pattern.permute.xlu0 3
    %366 = vperm.xlu0 %365, %v23
    %v367 = vpop.permute.xlu0 %366
    %369 = vset.pattern.permute.xlu0 3
    %370 = vperm.xlu0 %369, %v24
    %v371 = vpop.permute.xlu0 %370
    %373 = vset.pattern.permute.xlu0 3
    %374 = vperm.xlu0 %373, %v25
    %v375 = vpop.permute.xlu0 %374
    %377 = vset.pattern.permute.xlu0 3
    %378 = vperm.xlu0 %377, %v26
    %v379 = vpop.permute.xlu0 %378
    %381 = vset.pattern.permute.xlu0 3
    %382 = vperm.xlu0 %381, %v27
    %v383 = vpop.permute.xlu0 %382
    %385 = vset.pattern.permute.xlu0 3
    %386 = vperm.xlu0 %385, %v28
    %v387 = vpop.permute.xlu0 %386
    %389 = vset.pattern.permute.xlu0 3
    %390 = vperm.xlu0 %389, %v29
    %v391 = vpop.permute.xlu0 %390
    %393 = vset.pattern.permute.xlu0 3
    %394 = vperm.xlu0 %393, %v30
    %v395 = vpop.permute.xlu0 %394
    %397 = vset.pattern.permute.xlu0 3
    %398 = vperm.xlu0 %397, %v31
    %v399 = vpop.permute.xlu0 %398
    %401 = vset.pattern.permute.xlu0 3
    %402 = vperm.xlu0 %401, %v32
    %v403 = vpop.permute.xlu0 %402
    %405 = vset.pattern.permute.xlu0 3
    %406 = vperm.xlu0 %405, %v33
    %v407 = vpop.permute.xlu0 %406
    %409 = vset.pattern.permute.xlu0 3
    %410 = vperm.xlu0 %409, %v34
    %v411 = vpop.permute.xlu0 %410
    %413 = vset.pattern.permute.xlu0 3
    %414 = vperm.xlu0 %413, %v35
    %v415 = vpop.permute.xlu0 %414
    %417 = vmatprep.subr.mxu0 0.0
    %418 = vmatpush1.msra.mxu0 %v336
    %419 = vmatprep.subr.mxu0 0.0
    %420 = vmatpush1.msra.mxu0 %v335
    %421 = vmatprep.subr.mxu0 0.0
    %422 = vmatpush1.msra.mxu0 %v334
    %423 = vmatprep.subr.mxu0 0.0
    %424 = vmatpush1.msra.mxu0 %v333
    %425 = vmatprep.subr.mxu0 0.0
    %426 = vmatpush1.msra.mxu0 %v332
    %427 = vmatprep.subr.mxu0 0.0
    %428 = vmatpush1.msra.mxu0 %v331
    %429 = vmatprep.subr.mxu0 0.0
    %430 = vmatpush1.msra.mxu0 %v330
    %431 = vmatprep.subr.mxu0 0.0
    %432 = vmatpush1.msra.mxu0 %v329
    %433 = vmatprep.subr.mxu0 0.0
    %434 = vmatpush1.msra.mxu0 %v328
    %435 = vmatprep.subr.mxu0 0.0
    %436 = vmatpush1.msra.mxu0 %v327
    %437 = vmatprep.subr.mxu0 0.0
    %438 = vmatpush1.msra.mxu0 %v326
    %439 = vmatprep.subr.mxu0 0.0
    %440 = vmatpush1.msra.mxu0 %v325
    %441 = vmatprep.subr.mxu0 0.0
    %442 = vmatpush1.msra.mxu0 %v324
    %443 = vmatprep.subr.mxu0 0.0
    %444 = vmatpush1.msra.mxu0 %v323
    %445 = vmatprep.subr.mxu0 0.0
    %446 = vmatpush1.msra.mxu0 %v322
    %447 = vmatprep.subr.mxu0 0.0
    %448 = vmatpush1.msra.mxu0 %v321
    %449 = vmatprep.subr.mxu0 0.0
    %450 = vmatpush2.msra.mxu0 0.0
    %451 = vmatprep.subr.mxu0 0.0
    %452 = vmatpush2.msra.mxu0 0.0
    %453 = vmatprep.subr.mxu0 0.0
    %454 = vmatpush2.msra.mxu0 0.0
    %455 = vmatprep.subr.mxu0 0.0
    %456 = vmatpush2.msra.mxu0 0.0
    %457 = vmatprep.subr.mxu0 0.0
    %458 = vmatpush2.msra.mxu0 0.0
    %459 = vmatprep.subr.mxu0 0.0
    %460 = vmatpush2.msra.mxu0 0.0
    %461 = vmatprep.subr.mxu0 0.0
    %462 = vmatpush2.msra.mxu0 0.0
    %463 = vmatprep.subr.mxu0 0.0
    %464 = vmatpush2.msra.mxu0 0.0
    %465 = vmatprep.subr.mxu0 0.0
    %466 = vmatpush2.msra.mxu0 0.0
    %467 = vmatprep.subr.mxu0 0.0
    %468 = vmatpush2.msra.mxu0 0.0
    %469 = vmatprep.subr.mxu0 0.0
    %470 = vmatpush2.msra.mxu0 0.0
    %471 = vmatprep.subr.mxu0 0.0
    %472 = vmatpush2.msra.mxu0 0.0
    %473 = vmatprep.subr.mxu0 0.0
    %474 = vmatpush2.msra.mxu0 0.0
    %475 = vmatprep.subr.mxu0 0.0
    %476 = vmatpush2.msra.mxu0 0.0
    %477 = vmatprep.subr.mxu0 0.0
    %478 = vmatpush2.msra.mxu0 0.0
    %479 = vmatprep.subr.mxu0 0.0
    %480 = vmatpush2.msra.mxu0 0.0
    %481 = vmatprep.mubr.f32.mxu0 0.0
    %482 = vmatmul.mubr.f32.gmra.mxu0 %v337
    %v483 = vpop.f32.mrf.mxu0
    %v484 = vadd.f32 %v355, %v483
    %v485 = vpop.f32.mrf.mxu0
    %486 = vmatprep.mubr.f32.mxu0 0.0
    %487 = vmatmul.mubr.f32.gmra.mxu0 %v338
    %v488 = vpop.f32.mrf.mxu0
    %v489 = vadd.f32 %v359, %v488
    %v490 = vpop.f32.mrf.mxu0
    %491 = vmatprep.mubr.f32.mxu0 0.0
    %492 = vmatmul.mubr.f32.gmra.mxu0 %v339
    %v493 = vpop.f32.mrf.mxu0
    %v494 = vadd.f32 %v363, %v493
    %v495 = vpop.f32.mrf.mxu0
    %496 = vmatprep.mubr.f32.mxu0 0.0
    %497 = vmatmul.mubr.f32.gmra.mxu0 %v340
    %v498 = vpop.f32.mrf.mxu0
    %v499 = vadd.f32 %v367, %v498
    %v500 = vpop.f32.mrf.mxu0
    %501 = vmatprep.mubr.f32.mxu0 0.0
    %502 = vmatmul.mubr.f32.gmra.mxu0 %v341
    %v503 = vpop.f32.mrf.mxu0
    %v504 = vadd.f32 %v371, %v503
    %v505 = vpop.f32.mrf.mxu0
    %506 = vmatprep.mubr.f32.mxu0 0.0
    %507 = vmatmul.mubr.f32.gmra.mxu0 %v342
    %v508 = vpop.f32.mrf.mxu0
    %v509 = vadd.f32 %v375, %v508
    %v510 = vpop.f32.mrf.mxu0
    %511 = vmatprep.mubr.f32.mxu0 0.0
    %512 = vmatmul.mubr.f32.gmra.mxu0 %v343
    %v513 = vpop.f32.mrf.mxu0
    %v514 = vadd.f32 %v379, %v513
    %v515 = vpop.f32.mrf.mxu0
    %516 = vmatprep.mubr.f32.mxu0 0.0
    %517 = vmatmul.mubr.f32.gmra.mxu0 %v344
    %v518 = vpop.f32.mrf.mxu0
    %v519 = vadd.f32 %v383, %v518
    %v520 = vpop.f32.mrf.mxu0
    %521 = vmatprep.mubr.f32.mxu0 0.0
    %522 = vmatmul.mubr.f32.gmra.mxu0 %v345
    %v523 = vpop.f32.mrf.mxu0
    %v524 = vadd.f32 %v387, %v523
    %v525 = vpop.f32.mrf.mxu0
    %526 = vmatprep.mubr.f32.mxu0 0.0
    %527 = vmatmul.mubr.f32.gmra.mxu0 %v346
    %v528 = vpop.f32.mrf.mxu0
    %v529 = vadd.f32 %v391, %v528
    %v530 = vpop.f32.mrf.mxu0
    %531 = vmatprep.mubr.f32.mxu0 0.0
    %532 = vmatmul.mubr.f32.gmra.mxu0 %v347
    %v533 = vpop.f32.mrf.mxu0
    %v534 = vadd.f32 %v395, %v533
    %v535 = vpop.f32.mrf.mxu0
    %536 = vmatprep.mubr.f32.mxu0 0.0
    %537 = vmatmul.mubr.f32.gmra.mxu0 %v348
    %v538 = vpop.f32.mrf.mxu0
    %v539 = vadd.f32 %v399, %v538
    %v540 = vpop.f32.mrf.mxu0
    %541 = vmatprep.mubr.f32.mxu0 0.0
    %542 = vmatmul.mubr.f32.gmra.mxu0 %v349
    %v543 = vpop.f32.mrf.mxu0
    %v544 = vadd.f32 %v403, %v543
    %v545 = vpop.f32.mrf.mxu0
    %546 = vmatprep.mubr.f32.mxu0 0.0
    %547 = vmatmul.mubr.f32.gmra.mxu0 %v350
    %v548 = vpop.f32.mrf.mxu0
    %v549 = vadd.f32 %v407, %v548
    %v550 = vpop.f32.mrf.mxu0
    %551 = vmatprep.mubr.f32.mxu0 0.0
    %552 = vmatmul.mubr.f32.gmra.mxu0 %v351
    %v553 = vpop.f32.mrf.mxu0
    %v554 = vadd.f32 %v411, %v553
    %v555 = vpop.f32.mrf.mxu0
    %556 = vmatprep.mubr.f32.mxu0 0.0
    %557 = vmatmul.mubr.f32.gmra.mxu0 %v352
    %v558 = vpop.f32.mrf.mxu0
    %v559 = vadd.f32 %v415, %v558
    %v560 = vpop.f32.mrf.mxu0
    %561 = vdwg.mxu0
    %v562 = vtanh.pop %v484
    %v563 = vtanh.pop %v489
    %v564 = vtanh.pop %v494
    %v565 = vtanh.pop %v499
    %v566 = vtanh.pop %v504
    %v567 = vtanh.pop %v509
    %v568 = vtanh.pop %v514
    %v569 = vtanh.pop %v519
    %v570 = vtanh.pop %v524
    %v571 = vtanh.pop %v529
    %v572 = vtanh.pop %v534
    %v573 = vtanh.pop %v539
    %v574 = vtanh.pop %v544
    %v575 = vtanh.pop %v549
    %v576 = vtanh.pop %v554
    %v577 = vtanh.pop %v559
    %578 = vset.pattern.permute.xlu0 4
    %579 = vperm.xlu0 %578, %v20
    %v580 = vpop.permute.xlu0 %579
    %582 = vset.pattern.permute.xlu0 4
    %583 = vperm.xlu0 %582, %v21
    %v584 = vpop.permute.xlu0 %583
    %586 = vset.pattern.permute.xlu0 4
    %587 = vperm.xlu0 %586, %v22
    %v588 = vpop.permute.xlu0 %587
    %590 = vset.pattern.permute.xlu0 4
    %591 = vperm.xlu0 %590, %v23
    %v592 = vpop.permute.xlu0 %591
    %594 = vset.pattern.permute.xlu0 4
    %595 = vperm.xlu0 %594, %v24
    %v596 = vpop.permute.xlu0 %595
    %598 = vset.pattern.permute.xlu0 4
    %599 = vperm.xlu0 %598, %v25
    %v600 = vpop.permute.xlu0 %599
    %602 = vset.pattern.permute.xlu0 4
    %603 = vperm.xlu0 %602, %v26
    %v604 = vpop.permute.xlu0 %603
    %606 = vset.pattern.permute.xlu0 4
    %607 = vperm.xlu0 %606, %v27
    %v608 = vpop.permute.xlu0 %607
    %610 = vset.pattern.permute.xlu0 4
    %611 = vperm.xlu0 %610, %v28
    %v612 = vpop.permute.xlu0 %611
    %614 = vset.pattern.permute.xlu0 4
    %615 = vperm.xlu0 %614, %v29
    %v616 = vpop.permute.xlu0 %615
    %618 = vset.pattern.permute.xlu0 4
    %619 = vperm.xlu0 %618, %v30
    %v620 = vpop.permute.xlu0 %619
    %622 = vset.pattern.permute.xlu0 4
    %623 = vperm.xlu0 %622, %v31
    %v624 = vpop.permute.xlu0 %623
    %626 = vset.pattern.permute.xlu0 4
    %627 = vperm.xlu0 %626, %v32
    %v628 = vpop.permute.xlu0 %627
    %630 = vset.pattern.permute.xlu0 4
    %631 = vperm.xlu0 %630, %v33
    %v632 = vpop.permute.xlu0 %631
    %634 = vset.pattern.permute.xlu0 4
    %635 = vperm.xlu0 %634, %v34
    %v636 = vpop.permute.xlu0 %635
    %638 = vset.pattern.permute.xlu0 4
    %639 = vperm.xlu0 %638, %v35
    %v640 = vpop.permute.xlu0 %639
    %v642 = vmul.f32 %v562, %v580
    %v643 = vmul.f32 %v563, %v584
    %v644 = vmul.f32 %v564, %v588
    %v645 = vmul.f32 %v565, %v592
    %v646 = vmul.f32 %v566, %v596
    %v647 = vmul.f32 %v567, %v600
    %v648 = vmul.f32 %v568, %v604
    %v649 = vmul.f32 %v569, %v608
    %v650 = vmul.f32 %v570, %v612
    %v651 = vmul.f32 %v571, %v616
    %v652 = vmul.f32 %v572, %v620
    %v653 = vmul.f32 %v573, %v624
    %v654 = vmul.f32 %v574, %v628
    %v655 = vmul.f32 %v575, %v632
    %v656 = vmul.f32 %v576, %v636
    %v657 = vmul.f32 %v577, %v640
    %v658 = vadd.f32 %v642, %v643
    %v659 = vadd.f32 %v658, %v644
    %v660 = vadd.f32 %v659, %v645
    %v661 = vadd.f32 %v660, %v646
    %v662 = vadd.f32 %v661, %v647
    %v663 = vadd.f32 %v662, %v648
    %v664 = vadd.f32 %v663, %v649
    %v665 = vadd.f32 %v664, %v650
    %v666 = vadd.f32 %v665, %v651
    %v667 = vadd.f32 %v666, %v652
    %v668 = vadd.f32 %v667, %v653
    %v669 = vadd.f32 %v668, %v654
    %v670 = vadd.f32 %v669, %v655
    %v671 = vadd.f32 %v670, %v656
    %v672 = vadd.f32 %v671, %v657
    %v673 = vrot.slane %v672, 4
    %v674 = vadd.f32 %v672, %v673
    %v675 = vrot.slane %v674, 2
    %v676 = vadd.f32 %v674, %v675
    %v677 = vrot.slane %v676, 1
    %v678 = vadd.f32 %v676, %v677
    %680 = vset.pattern.permute.xlu0 5
    %681 = vperm.xlu0 %680, %v36
    %v682 = vpop.permute.xlu0 %681
    %v684 = vadd.f32 %v678, %v682
    %685 = vst [vmem:[#allocation2] sm:$0x1] %v684
    // Predicated region
    $region18: #{tpu_custom_call.1} parent=1 // pred_check
      _
    $region19: #{tpu_custom_call.1} parent=1 // pred_check_branch
      %687 = sbr.rel (0) target = $region21
    $region20: #{tpu_custom_call.1} parent=1 // pred_region
      %s689 = ssub.s32 16, 16
      %690 = vsyncadd [#allocation3], %s689
      %s692 = sshll.u32 [#allocation2], 4
      %s693 = int_to_ptr.vmem [resolvable:$true] %s692
      %695 = dma.vmem_to_hbm [thread:$0]  %s693, 16, %s4, [#allocation3]
    $region21: #{tpu_custom_call.1} parent=1 // pred_fallthru
      _
    // Predicated region
    $region22: #{tpu_custom_call.1} parent=1 // pred_check
      _
    $region23: #{tpu_custom_call.1} parent=1 // pred_check_branch
      %697 = sbr.rel (0) target = $region25
    $region24: #{tpu_custom_call.1} parent=1 // pred_region
      %698 = dma.done [#allocation3], 16
    $region25: #{tpu_custom_call.1} parent=1 // pred_fallthru
      _
    %699 = vsyncpa [#allocation3], 1

</llo_original>
